<compile_context>
chip_gen: v7x
topology: tpu7x:2x2x1
jax: 0.10.0
libtpu: 0.0.40
codegen_flags: <defaults>
</compile_context>

<pallas_src>
import math
from functools import partial

import jax
import jax.numpy as jnp
from jax.experimental import pallas as pl
from jax.experimental.pallas import tpu as pltpu

# ---------------- model hyper-params (small, consistent with the module) --------------
BATCH = 4
BACKBONE_OUT = 32          # backbone.out_features
HEIGHT = WIDTH = 8
HIDDEN = 256               # bottleneck Linear output (fixed at 256 in the module)
BOTTLENECK_DIM = 64        # contrast_layer output dim (module default -1 is a placeholder)
NUM_CLASSES = 16
BN_EPS = 1e-5
L2_EPS = 1e-12             # F.normalize default eps

SUBLANE = 8                # f32 sublane tile
LANE = 128                 # lane tile


def _round_up(x, m):
    return (x + m - 1) // m * m


PACK = _round_up(BOTTLENECK_DIM + NUM_CLASSES, LANE)   # merged contrast|logits lane width (128)


def classifier_kernel(
    x_ref,        # (Bp, C, HWp)        f32 backbone feature map, spatial flattened + 0-padded
    w1_ref,       # (C, 256)            bf16 bottleneck Linear with eval-BN folded in
    w23_ref,      # (256, PACK)         bf16 merged [contrast | classifier | 0] weight
    bias_ref,     # (1, 256 + PACK)     f32  merged [b1 | b2 | b3 | 0] biases
    out_ref,      # (Bp, 256 + featpad + PACK) f32 lane-dense output slab
    *, inv_hw, dc, k,
):
    Bp, C, _ = x_ref.shape
    hidden = w1_ref.shape[1]
    pack = w23_ref.shape[1]
    feat_pad = out_ref.shape[1] - hidden - pack - C

    # --- pool_layer: AdaptiveAvgPool2d((1,1)) + Flatten == mean over spatial dims ---
    # Spatial axis is zero-padded to a full lane tile in the wrapper; the sum is unaffected
    # and 1/(H*W) uses the real extent, folded into one compile-time scale.
    feat = jnp.sum(x_ref[...], axis=-1) * inv_hw                          # (Bp, C) f32

    # --- bottleneck: Linear (eval BatchNorm1d folded into w1/b1) -> ReLU ---
    b1 = bias_ref[:, 0:hidden]                                            # (1, 256)
    h = jnp.dot(feat.astype(w1_ref.dtype), w1_ref[...],
                preferred_element_type=jnp.float32) + b1
    h = jnp.maximum(h, 0.0)                                               # (Bp, 256) f32
    hb = h.astype(w23_ref.dtype)

    # --- merged contrast + classifier Linear: one 128-wide MXU call (Dropout = id in eval) ---
    b23 = bias_ref[:, hidden:hidden + pack]                               # (1, 128)
    cl = jnp.dot(hb, w23_ref[...], preferred_element_type=jnp.float32) + b23   # (Bp, 128)

    # --- F.normalize(p=2, dim=1) applied to lanes [0, dc) only; logits lanes untouched ---
    lane = jax.lax.broadcasted_iota(jnp.int32, cl.shape, 1)
    is_contrast = lane < dc
    csq = jnp.where(is_contrast, cl, 0.0)
    sumsq = jnp.sum(csq * csq, axis=1, keepdims=True)
    # 1/max(||c||, eps) == rsqrt(max(sumsq, eps^2)); runs on the EUP (no divide chain).
    inv_norm = jax.lax.rsqrt(jnp.maximum(sumsq, L2_EPS * L2_EPS))
    merged = cl * jnp.where(is_contrast, inv_norm, 1.0)   # [contrast(dc) | logits(k) | 0]

    # --- single unmasked, lane-dense store of the whole output slab ---
    pieces = [h, feat]
    if feat_pad:
        pieces.append(jnp.zeros((Bp, feat_pad), jnp.float32))
    pieces.append(merged)
    out_ref[...] = jnp.concatenate(pieces, axis=-1)


def make_params(key, bn_mean=None, bn_var=None, bn_gamma=None, bn_beta=None):
    """Deterministic parameter build mirroring initialize_layer():
       kaiming_normal_ on Linear weights (std = sqrt(2/fan_in)), zero biases,
       BatchNorm weight=1 / bias=0, fresh running stats (mean=0, var=1) by default.
       The eval-mode BatchNorm1d is folded into Linear 1 using the *general* fold
       (parameterized on running stats), the contrast/classifier Linears are merged into one
       lane-tile-wide weight, and all three biases are packed into a single (1, 384) array.
       MXU weights are pre-cast to bf16 (f32 accumulation in-kernel)."""
    k1, k2, k3 = jax.random.split(key, 3)

    def kaiming(k, fan_in, fan_out):
        std = math.sqrt(2.0 / fan_in)
        # stored as (in, out), i.e. transposed relative to torch's (out, in)
        return jax.random.normal(k, (fan_in, fan_out), jnp.float32) * std

    w1 = kaiming(k1, BACKBONE_OUT, HIDDEN)
    b1 = jnp.zeros((HIDDEN,), jnp.float32)
    w2 = kaiming(k2, HIDDEN, BOTTLENECK_DIM)
    b2 = jnp.zeros((BOTTLENECK_DIM,), jnp.float32)
    w3 = kaiming(k3, HIDDEN, NUM_CLASSES)
    b3 = jnp.zeros((NUM_CLASSES,), jnp.float32)

    # General eval-mode BatchNorm1d fold:  y = gamma * (x - mean)/sqrt(var+eps) + beta
    #   w1' = w1 * gamma/sqrt(var+eps) ;  b1' = (b1 - mean)*gamma/sqrt(var+eps) + beta
    bn_mean = jnp.zeros((HIDDEN,), jnp.float32) if bn_mean is None else bn_mean
    bn_var = jnp.ones((HIDDEN,), jnp.float32) if bn_var is None else bn_var
    bn_gamma = jnp.ones((HIDDEN,), jnp.float32) if bn_gamma is None else bn_gamma
    bn_beta = jnp.zeros((HIDDEN,), jnp.float32) if bn_beta is None else bn_beta
    bn_scale = bn_gamma * jax.lax.rsqrt(bn_var + BN_EPS)
    w1f = w1 * bn_scale[None, :]
    b1f = (b1 - bn_mean) * bn_scale + bn_beta

    # Merge contrast (256xDc) and classifier (256xK) into one (256, PACK) RHS + (PACK,) bias.
    pad = PACK - BOTTLENECK_DIM - NUM_CLASSES
    w23 = jnp.concatenate([w2, w3, jnp.zeros((HIDDEN, pad), jnp.float32)], axis=1)
    b23 = jnp.concatenate([b2, b3, jnp.zeros((pad,), jnp.float32)], axis=0)

    biases = jnp.concatenate([b1f, b23], axis=0).reshape(1, HIDDEN + PACK)   # (1, 384) f32

    return w1f.astype(jnp.bfloat16), w23.astype(jnp.bfloat16), biases


def classifier_forward(x, params):
    w1, w23, biases = params
    B, C, H, W = x.shape
    hidden = w1.shape[1]
    pack = w23.shape[1]

    # Pad batch to a full f32 sublane tile and the spatial dim to a full lane tile so both
    # the loads and the DMA rows are unmasked/contiguous; padded rows/lanes are zeros.
    Bp = max(SUBLANE, _round_up(B, SUBLANE))
    HWp = _round_up(H * W, LANE)
    x3 = x.reshape(B, C, H * W).astype(jnp.float32)
    x3 = jnp.pad(x3, ((0, Bp - B), (0, 0), (0, HWp - H * W)))

    feat_w = _round_up(C, LANE)            # feat region padded to whole lane tiles
    out_w = hidden + feat_w + pack         # 256 + 128 + 128 = 512 (lane-dense, unmasked)

    vmem = pl.BlockSpec(memory_space=pltpu.MemorySpace.VMEM)
    out = pl.pallas_call(
        partial(classifier_kernel, inv_hw=1.0 / (H * W),
                dc=BOTTLENECK_DIM, k=NUM_CLASSES),
        out_shape=jax.ShapeDtypeStruct((Bp, out_w), jnp.float32),
        in_specs=[vmem] * 4,
        out_specs=vmem,
    )(x3, w1, w23, biases)

    f0 = hidden                  # start of features region
    p0 = hidden + feat_w         # start of merged contrast|logits region
    return {
        "features": out[:B, f0:f0 + C],
        "norm_features": out[:B, 0:hidden],
        "contrast_features": out[:B, p0:p0 + BOTTLENECK_DIM],
        "logits": out[:B, p0 + BOTTLENECK_DIM:p0 + BOTTLENECK_DIM + NUM_CLASSES],
    }


def reference_forward(x, params):
    """Pure-JAX reference using the same (folded, merged, bf16) parameters."""
    w1, w23, biases = params
    feat = x.astype(jnp.float32).mean(axis=(2, 3))                           # (B, C)
    b1 = biases[0, :HIDDEN]
    b23 = biases[0, HIDDEN:]
    h = jnp.maximum(
        jnp.dot(feat.astype(jnp.bfloat16), w1, preferred_element_type=jnp.float32) + b1, 0.0)
    cl = jnp.dot(h.astype(jnp.bfloat16), w23, preferred_element_type=jnp.float32) + b23
    c = cl[:, :BOTTLENECK_DIM]
    logits = cl[:, BOTTLENECK_DIM:BOTTLENECK_DIM + NUM_CLASSES]
    inv = jax.lax.rsqrt(jnp.maximum(jnp.sum(c * c, axis=1, keepdims=True), L2_EPS * L2_EPS))
    return {"features": feat, "norm_features": h,
            "contrast_features": c * inv, "logits": logits}


if __name__ == "__main__":
    key = jax.random.PRNGKey(0)
    kx, kp = jax.random.split(key)
    # NCHW, as the PyTorch backbone would produce / consume
    x = jax.random.normal(kx, (BATCH, BACKBONE_OUT, HEIGHT, WIDTH), jnp.float32)
    params = make_params(kp)

    end_points = classifier_forward(x, params)
    jax.block_until_ready(end_points)

    # correctness vs pure-JAX reference (same bf16 params, f32 accumulation)
    ref = reference_forward(x, params)
    for name in ("features", "norm_features", "contrast_features", "logits"):
        assert end_points[name].shape == ref[name].shape, name
        assert bool(jnp.allclose(end_points[name], ref[name], atol=2e-2, rtol=2e-2)), name

    # light sanity checks (shapes + L2-normalized rows)
    assert end_points["features"].shape == (BATCH, BACKBONE_OUT)
    assert end_points["norm_features"].shape == (BATCH, HIDDEN)
    assert end_points["contrast_features"].shape == (BATCH, BOTTLENECK_DIM)
    assert end_points["logits"].shape == (BATCH, NUM_CLASSES)
    row_norms = jnp.linalg.norm(end_points["contrast_features"], axis=1)
    assert bool(jnp.all(jnp.abs(row_norms - 1.0) < 1e-3))
    assert bool(jnp.all(jnp.isfinite(end_points["logits"])))

    print("KERNEL_OK")
</pallas_src>

<mosaic_0001>
module attributes {stable_mosaic.version = 11 : i64} {
  func.func @classifier_kernel(%arg0: memref<8x32x128xf32, #tpu.memory_space<vmem>>, %arg1: memref<32x256xbf16, #tpu.memory_space<vmem>>, %arg2: memref<256x128xbf16, #tpu.memory_space<vmem>>, %arg3: memref<1x384xf32, #tpu.memory_space<vmem>>, %arg4: memref<8x512xf32, #tpu.memory_space<vmem>>) attributes {dimension_semantics = [], scalar_prefetch = 0 : i64, scratch_operands = 0 : i64, tpu.core_type = #tpu.core_type<tc>} {
    %c0 = arith.constant 0 : index
    %c0_0 = arith.constant 0 : index
    %c0_1 = arith.constant 0 : index
    %0 = vector.load %arg0[%c0, %c0_0, %c0_1] : memref<8x32x128xf32, #tpu.memory_space<vmem>>, vector<8x32x128xf32>
    %cst = arith.constant dense<0.000000e+00> : vector<8x32xf32>
    %1 = vector.multi_reduction <add>, %0, %cst [2] : vector<8x32x128xf32> to vector<8x32xf32>
    %cst_2 = arith.constant 1.562500e-02 : f32
    %2 = vector.broadcast %cst_2 : f32 to vector<8x32xf32>
    %3 = arith.mulf %1, %2 : vector<8x32xf32>
    %c0_3 = arith.constant 0 : index
    %c0_4 = arith.constant 0 : index
    %4 = vector.load %arg3[%c0_3, %c0_4] : memref<1x384xf32, #tpu.memory_space<vmem>>, vector<1x256xf32>
    %5 = arith.truncf %3 : vector<8x32xf32> to vector<8x32xbf16>
    %c0_5 = arith.constant 0 : index
    %c0_6 = arith.constant 0 : index
    %6 = vector.load %arg1[%c0_5, %c0_6] : memref<32x256xbf16, #tpu.memory_space<vmem>>, vector<32x256xbf16>
    %cst_7 = arith.constant dense<0.000000e+00> : vector<8x256xf32>
    %7 = tpu.matmul %5, %6, %cst_7 {dimension_numbers = #tpu.dot_dimension_numbers<[1], [0], [0], [1], [0, 0, 1, 1], [], []>} : vector<8x32xbf16>, vector<32x256xbf16>, vector<8x256xf32> -> vector<8x256xf32>
    %8 = vector.broadcast %4 : vector<1x256xf32> to vector<8x256xf32>
    %9 = arith.addf %7, %8 : vector<8x256xf32>
    %cst_8 = arith.constant 0.000000e+00 : f32
    %10 = vector.broadcast %cst_8 : f32 to vector<8x256xf32>
    %11 = arith.maximumf %9, %10 : vector<8x256xf32>
    %12 = arith.truncf %11 : vector<8x256xf32> to vector<8x256xbf16>
    %c0_9 = arith.constant 0 : index
    %c256 = arith.constant 256 : index
    %13 = vector.load %arg3[%c0_9, %c256] : memref<1x384xf32, #tpu.memory_space<vmem>>, vector<1x128xf32>
    %c0_10 = arith.constant 0 : index
    %c0_11 = arith.constant 0 : index
    %14 = vector.load %arg2[%c0_10, %c0_11] : memref<256x128xbf16, #tpu.memory_space<vmem>>, vector<256x128xbf16>
    %cst_12 = arith.constant dense<0.000000e+00> : vector<8x128xf32>
    %15 = tpu.matmul %12, %14, %cst_12 {dimension_numbers = #tpu.dot_dimension_numbers<[1], [0], [0], [1], [0, 0, 1, 1], [], []>} : vector<8x256xbf16>, vector<256x128xbf16>, vector<8x128xf32> -> vector<8x128xf32>
    %16 = vector.broadcast %13 : vector<1x128xf32> to vector<8x128xf32>
    %17 = arith.addf %15, %16 : vector<8x128xf32>
    %18 = tpu.iota {dimensions = array<i32: 1>} : vector<8x128xi32>
    %c64_i32 = arith.constant 64 : i32
    %19 = vector.broadcast %c64_i32 : i32 to vector<8x128xi32>
    %20 = arith.cmpi slt, %18, %19 : vector<8x128xi32>
    %cst_13 = arith.constant 0.000000e+00 : f32
    %21 = vector.broadcast %cst_13 : f32 to vector<8x128xf32>
    %22 = arith.select %20, %17, %21 : vector<8x128xi1>, vector<8x128xf32>
    %23 = arith.mulf %22, %22 : vector<8x128xf32>
    %cst_14 = arith.constant dense<0.000000e+00> : vector<8xf32>
    %24 = vector.multi_reduction <add>, %23, %cst_14 [1] : vector<8x128xf32> to vector<8xf32>
    %25 = vector.shape_cast %24 : vector<8xf32> to vector<8x1xf32>
    %cst_15 = arith.constant 1.000000e-24 : f32
    %26 = vector.broadcast %cst_15 : f32 to vector<8x1xf32>
    %27 = arith.maximumf %25, %26 : vector<8x1xf32>
    %28 = math.rsqrt %27 : vector<8x1xf32>
    %cst_16 = arith.constant 1.000000e+00 : f32
    %29 = vector.shape_cast %28 : vector<8x1xf32> to vector<8x1xf32>
    %30 = vector.broadcast %29 : vector<8x1xf32> to vector<8x128xf32>
    %31 = vector.broadcast %cst_16 : f32 to vector<8x128xf32>
    %32 = arith.select %20, %30, %31 : vector<8x128xi1>, vector<8x128xf32>
    %33 = arith.mulf %17, %32 : vector<8x128xf32>
    %cst_17 = arith.constant 0.000000e+00 : f32
    %34 = vector.broadcast %cst_17 : f32 to vector<8x96xf32>
    %35 = tpu.concatenate %11, %3, %34, %33 in 1 : vector<8x256xf32>, vector<8x32xf32>, vector<8x96xf32>, vector<8x128xf32> -> vector<8x512xf32>
    %c0_18 = arith.constant 0 : index
    %c0_19 = arith.constant 0 : index
    %36 = vector.load %arg4[%c0_18, %c0_19] : memref<8x512xf32, #tpu.memory_space<vmem>>, vector<8x512xf32>
    tpu.vector_store %arg4[%c0_18, %c0_19], %35 {strides = array<i32>} : memref<8x512xf32, #tpu.memory_space<vmem>>, vector<8x512xf32>,
    return
  }
}

</mosaic_0001>

<llo_original>
// kernel: tpu_custom_call.1
$region0: #{tpu_custom_call.1}
  #allocation0 [shape = 'u32[]', space=smem, size = 0x4, offset = 0x4, fixed_abs, tag = 'smem constant byte address 0x4 - core index']
  #allocation1 [shape = 'u32[144,128]{1,0:T(1,128)}', space=vmem, size = 0x12000, scoped, tag = 'internal scratch']
  %s0 = inlined_call_operand.hbm [shape: f32[8,32,128], index: 0, kind: input, shape index: {}]
  %s1 = inlined_call_operand.hbm [shape: bf16[32,256], index: 1, kind: input, shape index: {}]
  %s2 = inlined_call_operand.hbm [shape: bf16[256,128], index: 2, kind: input, shape index: {}]
  %s3 = inlined_call_operand.vmem [shape: f32[1,384], index: 3, kind: input, shape index: {}]
  %s4 = inlined_call_operand.hbm [shape: f32[8,512], index: 4, kind: output, shape index: {}]
  %s5 = sld [smem:[#allocation0]]
  $region38: #{tpu_custom_call.1} parent=0
    _
  %s7 = ssub.s32 1, %s5
  %s8 = scalar_select 0, %s7, %s5
  $region1: #{tpu_custom_call.1} parent=0
    #allocation2 [shape = 'u8[131072]{0}', space=vmem, size = 0x20000, scoped, tag = 'input window, operand 0, single buffered']
    #allocation3 [shape = 's32[1]{0}', space=sflag, size = 0x4, scoped, tag = 'scoped memory for tpu_custom_call.1']
    #allocation4 [shape = 's32[1]{0}', space=sflag, size = 0x4, scoped, tag = 'scoped memory for tpu_custom_call.1']
    #allocation5 [shape = 'u8[16384]{0}', space=vmem, size = 0x4000, scoped, tag = 'input window, operand 1, single buffered']
    #allocation6 [shape = 's32[1]{0}', space=sflag, size = 0x4, scoped, tag = 'scoped memory for tpu_custom_call.1']
    #allocation7 [shape = 'u8[65536]{0}', space=vmem, size = 0x10000, scoped, tag = 'input window, operand 2, single buffered']
    #allocation8 [shape = 'u8[16384]{0}', space=vmem, size = 0x4000, scoped, tag = 'output window, operand 0, single buffered']
    %9 = vsyncpa [#allocation3], 0
    %10 = vsyncpa [#allocation6], 0
    %11 = vsyncpa [#allocation4], 0
    // Predicated region
    $region2: #{tpu_custom_call.1} parent=1 // pred_check
      _
    $region3: #{tpu_custom_call.1} parent=1 // pred_check_branch
      %13 = sbr.rel (0) target = $region5
    $region4: #{tpu_custom_call.1} parent=1 // pred_region
      %s15 = ssub.s32 4096, 4096
      %16 = vsyncadd [#allocation3], %s15
      %s17 = sshll.u32 [#allocation2], 4
      %s18 = int_to_ptr.vmem [resolvable:$true] %s17
      %23 = dma.hbm_to_vmem [thread:$0]  %s0, 4096, %s18, [#allocation3], 128, 128, 8
    $region5: #{tpu_custom_call.1} parent=1 // pred_fallthru
      _
    // Predicated region
    $region6: #{tpu_custom_call.1} parent=1 // pred_check
      _
    $region7: #{tpu_custom_call.1} parent=1 // pred_check_branch
      %25 = sbr.rel (0) target = $region9
    $region8: #{tpu_custom_call.1} parent=1 // pred_region
      %s27 = ssub.s32 512, 512
      %28 = vsyncadd [#allocation6], %s27
      %s29 = sshll.u32 [#allocation5], 4
      %s30 = int_to_ptr.vmem [resolvable:$true] %s29
      %35 = dma.hbm_to_vmem [thread:$0]  %s1, 512, %s30, [#allocation6], 128, 128, 8
    $region9: #{tpu_custom_call.1} parent=1 // pred_fallthru
      _
    // Predicated region
    $region10: #{tpu_custom_call.1} parent=1 // pred_check
      _
    $region11: #{tpu_custom_call.1} parent=1 // pred_check_branch
      %37 = sbr.rel (0) target = $region13
    $region12: #{tpu_custom_call.1} parent=1 // pred_region
      %s39 = ssub.s32 2048, 2048
      %40 = vsyncadd [#allocation6], %s39
      %s41 = sshll.u32 [#allocation7], 4
      %s42 = int_to_ptr.vmem [resolvable:$true] %s41
      %47 = dma.hbm_to_vmem [thread:$0]  %s2, 2048, %s42, [#allocation6], 64, 64, 4
    $region13: #{tpu_custom_call.1} parent=1 // pred_fallthru
      _
    // Predicated region
    $region14: #{tpu_custom_call.1} parent=1 // pred_check
      _
    $region15: #{tpu_custom_call.1} parent=1 // pred_check_branch
      %49 = sbr.rel (0) target = $region17
    $region16: #{tpu_custom_call.1} parent=1 // pred_region
      _
    $region17: #{tpu_custom_call.1} parent=1 // pred_fallthru
      _
    // Predicated region
    $region18: #{tpu_custom_call.1} parent=1 // pred_check
      _
    $region19: #{tpu_custom_call.1} parent=1 // pred_check_branch
      %51 = sbr.rel (0) target = $region21
    $region20: #{tpu_custom_call.1} parent=1 // pred_region
      %52 = dma.done [#allocation3], 4096
    $region21: #{tpu_custom_call.1} parent=1 // pred_fallthru
      _
    // Predicated region
    $region22: #{tpu_custom_call.1} parent=1 // pred_check
      _
    $region23: #{tpu_custom_call.1} parent=1 // pred_check_branch
      %54 = sbr.rel (0) target = $region25
    $region24: #{tpu_custom_call.1} parent=1 // pred_region
      %55 = dma.done [#allocation6], 512
    $region25: #{tpu_custom_call.1} parent=1 // pred_fallthru
      _
    // Predicated region
    $region26: #{tpu_custom_call.1} parent=1 // pred_check
      _
    $region27: #{tpu_custom_call.1} parent=1 // pred_check_branch
      %57 = sbr.rel (0) target = $region29
    $region28: #{tpu_custom_call.1} parent=1 // pred_region
      %58 = dma.done [#allocation6], 2048
    $region29: #{tpu_custom_call.1} parent=1 // pred_fallthru
      _
    %v60 = vld [vmem:[#allocation2] sm:$0xff]
    %v61 = vld [vmem:[#allocation2 + $0x8] sm:$0xff]
    %v62 = vld [vmem:[#allocation2 + $0x10] sm:$0xff]
    %v63 = vld [vmem:[#allocation2 + $0x18] sm:$0xff]
    %v64 = vld [vmem:[#allocation2 + $0x20] sm:$0xff]
    %v65 = vld [vmem:[#allocation2 + $0x28] sm:$0xff]
    %v66 = vld [vmem:[#allocation2 + $0x30] sm:$0xff]
    %v67 = vld [vmem:[#allocation2 + $0x38] sm:$0xff]
    %v68 = vld [vmem:[#allocation2 + $0x40] sm:$0xff]
    %v69 = vld [vmem:[#allocation2 + $0x48] sm:$0xff]
    %v70 = vld [vmem:[#allocation2 + $0x50] sm:$0xff]
    %v71 = vld [vmem:[#allocation2 + $0x58] sm:$0xff]
    %v72 = vld [vmem:[#allocation2 + $0x60] sm:$0xff]
    %v73 = vld [vmem:[#allocation2 + $0x68] sm:$0xff]
    %v74 = vld [vmem:[#allocation2 + $0x70] sm:$0xff]
    %v75 = vld [vmem:[#allocation2 + $0x78] sm:$0xff]
    %v76 = vld [vmem:[#allocation2 + $0x80] sm:$0xff]
    %v77 = vld [vmem:[#allocation2 + $0x88] sm:$0xff]
    %v78 = vld [vmem:[#allocation2 + $0x90] sm:$0xff]
    %v79 = vld [vmem:[#allocation2 + $0x98] sm:$0xff]
    %v80 = vld [vmem:[#allocation2 + $0xa0] sm:$0xff]
    %v81 = vld [vmem:[#allocation2 + $0xa8] sm:$0xff]
    %v82 = vld [vmem:[#allocation2 + $0xb0] sm:$0xff]
    %v83 = vld [vmem:[#allocation2 + $0xb8] sm:$0xff]
    %v84 = vld [vmem:[#allocation2 + $0xc0] sm:$0xff]
    %v85 = vld [vmem:[#allocation2 + $0xc8] sm:$0xff]
    %v86 = vld [vmem:[#allocation2 + $0xd0] sm:$0xff]
    %v87 = vld [vmem:[#allocation2 + $0xd8] sm:$0xff]
    %v88 = vld [vmem:[#allocation2 + $0xe0] sm:$0xff]
    %v89 = vld [vmem:[#allocation2 + $0xe8] sm:$0xff]
    %v90 = vld [vmem:[#allocation2 + $0xf0] sm:$0xff]
    %v91 = vld [vmem:[#allocation2 + $0xf8] sm:$0xff]
    %92 = vadd.xlane.f32.xlu0 %v60
    %v93 = vpop.xlane.xlu0 %92
    %94 = vadd.xlane.f32.xlu0 %v61
    %v95 = vpop.xlane.xlu0 %94
    %96 = vadd.xlane.f32.xlu0 %v62
    %v97 = vpop.xlane.xlu0 %96
    %98 = vadd.xlane.f32.xlu0 %v63
    %v99 = vpop.xlane.xlu0 %98
    %100 = vadd.xlane.f32.xlu0 %v64
    %v101 = vpop.xlane.xlu0 %100
    %102 = vadd.xlane.f32.xlu0 %v65
    %v103 = vpop.xlane.xlu0 %102
    %104 = vadd.xlane.f32.xlu0 %v66
    %v105 = vpop.xlane.xlu0 %104
    %106 = vadd.xlane.f32.xlu0 %v67
    %v107 = vpop.xlane.xlu0 %106
    %108 = vadd.xlane.f32.xlu0 %v68
    %v109 = vpop.xlane.xlu0 %108
    %110 = vadd.xlane.f32.xlu0 %v69
    %v111 = vpop.xlane.xlu0 %110
    %112 = vadd.xlane.f32.xlu0 %v70
    %v113 = vpop.xlane.xlu0 %112
    %114 = vadd.xlane.f32.xlu0 %v71
    %v115 = vpop.xlane.xlu0 %114
    %116 = vadd.xlane.f32.xlu0 %v72
    %v117 = vpop.xlane.xlu0 %116
    %118 = vadd.xlane.f32.xlu0 %v73
    %v119 = vpop.xlane.xlu0 %118
    %120 = vadd.xlane.f32.xlu0 %v74
    %v121 = vpop.xlane.xlu0 %120
    %122 = vadd.xlane.f32.xlu0 %v75
    %v123 = vpop.xlane.xlu0 %122
    %124 = vadd.xlane.f32.xlu0 %v76
    %v125 = vpop.xlane.xlu0 %124
    %126 = vadd.xlane.f32.xlu0 %v77
    %v127 = vpop.xlane.xlu0 %126
    %128 = vadd.xlane.f32.xlu0 %v78
    %v129 = vpop.xlane.xlu0 %128
    %130 = vadd.xlane.f32.xlu0 %v79
    %v131 = vpop.xlane.xlu0 %130
    %132 = vadd.xlane.f32.xlu0 %v80
    %v133 = vpop.xlane.xlu0 %132
    %134 = vadd.xlane.f32.xlu0 %v81
    %v135 = vpop.xlane.xlu0 %134
    %136 = vadd.xlane.f32.xlu0 %v82
    %v137 = vpop.xlane.xlu0 %136
    %138 = vadd.xlane.f32.xlu0 %v83
    %v139 = vpop.xlane.xlu0 %138
    %140 = vadd.xlane.f32.xlu0 %v84
    %v141 = vpop.xlane.xlu0 %140
    %142 = vadd.xlane.f32.xlu0 %v85
    %v143 = vpop.xlane.xlu0 %142
    %144 = vadd.xlane.f32.xlu0 %v86
    %v145 = vpop.xlane.xlu0 %144
    %146 = vadd.xlane.f32.xlu0 %v87
    %v147 = vpop.xlane.xlu0 %146
    %148 = vadd.xlane.f32.xlu0 %v88
    %v149 = vpop.xlane.xlu0 %148
    %150 = vadd.xlane.f32.xlu0 %v89
    %v151 = vpop.xlane.xlu0 %150
    %152 = vadd.xlane.f32.xlu0 %v90
    %v153 = vpop.xlane.xlu0 %152
    %154 = vadd.xlane.f32.xlu0 %v91
    %v155 = vpop.xlane.xlu0 %154
    %v156 = vmul.f32 %v93, 0.015625
    %v157 = vmul.f32 %v95, 0.015625
    %v158 = vmul.f32 %v97, 0.015625
    %v159 = vmul.f32 %v99, 0.015625
    %v160 = vmul.f32 %v101, 0.015625
    %v161 = vmul.f32 %v103, 0.015625
    %v162 = vmul.f32 %v105, 0.015625
    %v163 = vmul.f32 %v107, 0.015625
    %v164 = vmul.f32 %v109, 0.015625
    %v165 = vmul.f32 %v111, 0.015625
    %v166 = vmul.f32 %v113, 0.015625
    %v167 = vmul.f32 %v115, 0.015625
    %v168 = vmul.f32 %v117, 0.015625
    %v169 = vmul.f32 %v119, 0.015625
    %v170 = vmul.f32 %v121, 0.015625
    %v171 = vmul.f32 %v123, 0.015625
    %v172 = vmul.f32 %v125, 0.015625
    %v173 = vmul.f32 %v127, 0.015625
    %v174 = vmul.f32 %v129, 0.015625
    %v175 = vmul.f32 %v131, 0.015625
    %v176 = vmul.f32 %v133, 0.015625
    %v177 = vmul.f32 %v135, 0.015625
    %v178 = vmul.f32 %v137, 0.015625
    %v179 = vmul.f32 %v139, 0.015625
    %v180 = vmul.f32 %v141, 0.015625
    %v181 = vmul.f32 %v143, 0.015625
    %v182 = vmul.f32 %v145, 0.015625
    %v183 = vmul.f32 %v147, 0.015625
    %v184 = vmul.f32 %v149, 0.015625
    %v185 = vmul.f32 %v151, 0.015625
    %v186 = vmul.f32 %v153, 0.015625
    %v187 = vmul.f32 %v155, 0.015625
    %v188 = vld [vmem:[%s3] sm:$0x3]
    %v189 = vpack.c.bf16 %v157, %v156
    %v190 = vpack.c.bf16 %v159, %v158
    %v191 = vpack.c.bf16 %v161, %v160
    %v192 = vpack.c.bf16 %v163, %v162
    %v193 = vpack.c.bf16 %v165, %v164
    %v194 = vpack.c.bf16 %v167, %v166
    %v195 = vpack.c.bf16 %v169, %v168
    %v196 = vpack.c.bf16 %v171, %v170
    %v197 = vpack.c.bf16 %v173, %v172
    %v198 = vpack.c.bf16 %v175, %v174
    %v199 = vpack.c.bf16 %v177, %v176
    %v200 = vpack.c.bf16 %v179, %v178
    %v201 = vpack.c.bf16 %v181, %v180
    %v202 = vpack.c.bf16 %v183, %v182
    %v203 = vpack.c.bf16 %v185, %v184
    %v204 = vpack.c.bf16 %v187, %v186
    %v205 = vld [vmem:[#allocation5] sm:$0xff]
    %v206 = vld [vmem:[#allocation5 + $0x8] sm:$0xff]
    %v207 = vld [vmem:[#allocation5 + $0x10] sm:$0xff]
    %v208 = vld [vmem:[#allocation5 + $0x18] sm:$0xff]
    %v210 = vlaneseq
    %v211 = vshrl.u32 %v210, 7
    %v212 = vsub.s32 0, %v211
    %v213 = vrot.slane %v188, %v212
    %v214 = vlaneseq
    %v215 = vshrl.u32 %v214, 7
    %v216 = vsub.s32 1, %v215
    %v217 = vrot.slane %v188, %v216
    %v236 = vunpack.c.l.b16 %v189
    %v237 = vunpack.c.h.b16 %v189
    %v238 = vunpack.c.l.b16 %v190
    %v239 = vunpack.c.h.b16 %v190
    %v240 = vunpack.c.l.b16 %v191
    %v241 = vunpack.c.h.b16 %v191
    %v242 = vunpack.c.l.b16 %v192
    %v243 = vunpack.c.h.b16 %v192
    %v244 = vunpack.c.l.b16 %v193
    %v245 = vunpack.c.h.b16 %v193
    %v246 = vunpack.c.l.b16 %v194
    %v247 = vunpack.c.h.b16 %v194
    %v248 = vunpack.c.l.b16 %v195
    %v249 = vunpack.c.h.b16 %v195
    %v250 = vunpack.c.l.b16 %v196
    %v251 = vunpack.c.h.b16 %v196
    %v252 = vunpack.c.l.b16 %v197
    %v253 = vunpack.c.h.b16 %v197
    %v254 = vunpack.c.l.b16 %v198
    %v255 = vunpack.c.h.b16 %v198
    %v256 = vunpack.c.l.b16 %v199
    %v257 = vunpack.c.h.b16 %v199
    %v258 = vunpack.c.l.b16 %v200
    %v259 = vunpack.c.h.b16 %v200
    %v260 = vunpack.c.l.b16 %v201
    %v261 = vunpack.c.h.b16 %v201
    %v262 = vunpack.c.l.b16 %v202
    %v263 = vunpack.c.h.b16 %v202
    %v264 = vunpack.c.l.b16 %v203
    %v265 = vunpack.c.h.b16 %v203
    %v266 = vunpack.c.l.b16 %v204
    %v267 = vunpack.c.h.b16 %v204
    %v268 = vlaneseq
    %v269 = vand.u32 %v268, 127
    %v270 = vlaneseq
    %v271 = vshrl.u32 %v270, 7
    %v272 = vsub.s32 %v269, %v271
    %v273 = vrot.slane %v236, %v272
    %v274 = vadd.s32 %v269, 4294967288
    %v275 = vlaneseq
    %v276 = vshrl.u32 %v275, 7
    %v277 = vsub.s32 %v274, %v276
    %v278 = vrot.slane %v237, %v277
    %vm279 = vcmask 130112
    %v280 = vsel %vm279, %v278, %v273
    %v281 = vadd.s32 %v269, 4294967280
    %v282 = vlaneseq
    %v283 = vshrl.u32 %v282, 7
    %v284 = vsub.s32 %v281, %v283
    %v285 = vrot.slane %v238, %v284
    %vm286 = vcmask 195712
    %v287 = vsel %vm286, %v285, %v280
    %v288 = vadd.s32 %v269, 4294967272
    %v289 = vlaneseq
    %v290 = vshrl.u32 %v289, 7
    %v291 = vsub.s32 %v288, %v290
    %v292 = vrot.slane %v239, %v291
    %vm293 = vcmask 261312
    %v294 = vsel %vm293, %v292, %v287
    %v295 = vlaneseq
    %v296 = vshrl.u32 %v295, 7
    %v297 = vsub.s32 %v269, %v296
    %v298 = vrot.slane %v240, %v297
    %v299 = vlaneseq
    %v300 = vshrl.u32 %v299, 7
    %v301 = vsub.s32 %v274, %v300
    %v302 = vrot.slane %v241, %v301
    %v303 = vsel %vm279, %v302, %v298
    %v304 = vlaneseq
    %v305 = vshrl.u32 %v304, 7
    %v306 = vsub.s32 %v281, %v305
    %v307 = vrot.slane %v242, %v306
    %v308 = vsel %vm286, %v307, %v303
    %v309 = vlaneseq
    %v310 = vshrl.u32 %v309, 7
    %v311 = vsub.s32 %v288, %v310
    %v312 = vrot.slane %v243, %v311
    %v313 = vsel %vm293, %v312, %v308
    %v314 = vlaneseq
    %v315 = vshrl.u32 %v314, 7
    %v316 = vsub.s32 %v269, %v315
    %v317 = vrot.slane %v244, %v316
    %v318 = vlaneseq
    %v319 = vshrl.u32 %v318, 7
    %v320 = vsub.s32 %v274, %v319
    %v321 = vrot.slane %v245, %v320
    %v322 = vsel %vm279, %v321, %v317
    %v323 = vlaneseq
    %v324 = vshrl.u32 %v323, 7
    %v325 = vsub.s32 %v281, %v324
    %v326 = vrot.slane %v246, %v325
    %v327 = vsel %vm286, %v326, %v322
    %v328 = vlaneseq
    %v329 = vshrl.u32 %v328, 7
    %v330 = vsub.s32 %v288, %v329
    %v331 = vrot.slane %v247, %v330
    %v332 = vsel %vm293, %v331, %v327
    %v333 = vlaneseq
    %v334 = vshrl.u32 %v333, 7
    %v335 = vsub.s32 %v269, %v334
    %v336 = vrot.slane %v248, %v335
    %v337 = vlaneseq
    %v338 = vshrl.u32 %v337, 7
    %v339 = vsub.s32 %v274, %v338
    %v340 = vrot.slane %v249, %v339
    %v341 = vsel %vm279, %v340, %v336
    %v342 = vlaneseq
    %v343 = vshrl.u32 %v342, 7
    %v344 = vsub.s32 %v281, %v343
    %v345 = vrot.slane %v250, %v344
    %v346 = vsel %vm286, %v345, %v341
    %v347 = vlaneseq
    %v348 = vshrl.u32 %v347, 7
    %v349 = vsub.s32 %v288, %v348
    %v350 = vrot.slane %v251, %v349
    %v351 = vsel %vm293, %v350, %v346
    %v352 = vlaneseq
    %v353 = vshrl.u32 %v352, 7
    %v354 = vsub.s32 %v269, %v353
    %v355 = vrot.slane %v252, %v354
    %v356 = vlaneseq
    %v357 = vshrl.u32 %v356, 7
    %v358 = vsub.s32 %v274, %v357
    %v359 = vrot.slane %v253, %v358
    %v360 = vsel %vm279, %v359, %v355
    %v361 = vlaneseq
    %v362 = vshrl.u32 %v361, 7
    %v363 = vsub.s32 %v281, %v362
    %v364 = vrot.slane %v254, %v363
    %v365 = vsel %vm286, %v364, %v360
    %v366 = vlaneseq
    %v367 = vshrl.u32 %v366, 7
    %v368 = vsub.s32 %v288, %v367
    %v369 = vrot.slane %v255, %v368
    %v370 = vsel %vm293, %v369, %v365
    %v371 = vlaneseq
    %v372 = vshrl.u32 %v371, 7
    %v373 = vsub.s32 %v269, %v372
    %v374 = vrot.slane %v256, %v373
    %v375 = vlaneseq
    %v376 = vshrl.u32 %v375, 7
    %v377 = vsub.s32 %v274, %v376
    %v378 = vrot.slane %v257, %v377
    %v379 = vsel %vm279, %v378, %v374
    %v380 = vlaneseq
    %v381 = vshrl.u32 %v380, 7
    %v382 = vsub.s32 %v281, %v381
    %v383 = vrot.slane %v258, %v382
    %v384 = vsel %vm286, %v383, %v379
    %v385 = vlaneseq
    %v386 = vshrl.u32 %v385, 7
    %v387 = vsub.s32 %v288, %v386
    %v388 = vrot.slane %v259, %v387
    %v389 = vsel %vm293, %v388, %v384
    %v390 = vlaneseq
    %v391 = vshrl.u32 %v390, 7
    %v392 = vsub.s32 %v269, %v391
    %v393 = vrot.slane %v260, %v392
    %v394 = vlaneseq
    %v395 = vshrl.u32 %v394, 7
    %v396 = vsub.s32 %v274, %v395
    %v397 = vrot.slane %v261, %v396
    %v398 = vsel %vm279, %v397, %v393
    %v399 = vlaneseq
    %v400 = vshrl.u32 %v399, 7
    %v401 = vsub.s32 %v281, %v400
    %v402 = vrot.slane %v262, %v401
    %v403 = vsel %vm286, %v402, %v398
    %v404 = vlaneseq
    %v405 = vshrl.u32 %v404, 7
    %v406 = vsub.s32 %v288, %v405
    %v407 = vrot.slane %v263, %v406
    %v408 = vsel %vm293, %v407, %v403
    %v409 = vlaneseq
    %v410 = vshrl.u32 %v409, 7
    %v411 = vsub.s32 %v269, %v410
    %v412 = vrot.slane %v264, %v411
    %v413 = vlaneseq
    %v414 = vshrl.u32 %v413, 7
    %v415 = vsub.s32 %v274, %v414
    %v416 = vrot.slane %v265, %v415
    %v417 = vsel %vm279, %v416, %v412
    %v418 = vlaneseq
    %v419 = vshrl.u32 %v418, 7
    %v420 = vsub.s32 %v281, %v419
    %v421 = vrot.slane %v266, %v420
    %v422 = vsel %vm286, %v421, %v417
    %v423 = vlaneseq
    %v424 = vshrl.u32 %v423, 7
    %v425 = vsub.s32 %v288, %v424
    %v426 = vrot.slane %v267, %v425
    %v427 = vsel %vm293, %v426, %v422
    %vm428 = vcmask 1041409
    %v429 = vsel %vm428, %v313, %v294
    %vm430 = vcmask 1042434
    %v431 = vsel %vm430, %v332, %v429
    %vm432 = vcmask 1043459
    %v433 = vsel %vm432, %v351, %v431
    %vm434 = vcmask 1044484
    %v435 = vsel %vm434, %v370, %v433
    %vm436 = vcmask 1045509
    %v437 = vsel %vm436, %v389, %v435
    %vm438 = vcmask 1046534
    %v439 = vsel %vm438, %v408, %v437
    %vm440 = vcmask 1047559
    %v441 = vsel %vm440, %v427, %v439
    %v442 = vpack.c.b16 %v441, %v441
    %v447 = vunpack.c.l.b16 %v205
    %v448 = vunpack.c.h.b16 %v205
    %v449 = vunpack.c.l.b16 %v206
    %v450 = vunpack.c.h.b16 %v206
    %v451 = vunpack.c.l.b16 %v207
    %v452 = vunpack.c.h.b16 %v207
    %v453 = vunpack.c.l.b16 %v208
    %v454 = vunpack.c.h.b16 %v208
    %v455 = vpack.c.b16 %v449, %v447
    %v456 = vpack.c.b16 %v450, %v448
    %v457 = vpack.c.b16 %v453, %v451
    %v458 = vpack.c.b16 %v454, %v452
    %vm463 = vcmask 261120
    %v465 = vsel %vm463, %v442, 0
    %467 = vmatprep.subr.bf16.mxu0 %v456
    %468 = vmatpush1.bf16.msra.mxu0 %v455
    %469 = vmatprep.subr.bf16.mxu0 %v458
    %470 = vmatpush1.bf16.msra.mxu0 %v457
    %471 = vmatprep.subr.bf16.mxu0 0
    %472 = vmatpush1.bf16.msra.mxu0 0
    %473 = vmatprep.subr.bf16.mxu0 0
    %474 = vmatpush1.bf16.msra.mxu0 0
    %475 = vmatprep.subr.bf16.mxu0 0
    %476 = vmatpush1.bf16.msra.mxu0 0
    %477 = vmatprep.subr.bf16.mxu0 0
    %478 = vmatpush1.bf16.msra.mxu0 0
    %479 = vmatprep.subr.bf16.mxu0 0
    %480 = vmatpush1.bf16.msra.mxu0 0
    %481 = vmatprep.subr.bf16.mxu0 0
    %482 = vmatpush1.bf16.msra.mxu0 0
    %483 = vmatprep.subr.bf16.mxu0 0
    %484 = vmatpush1.bf16.msra.mxu0 0
    %485 = vmatprep.subr.bf16.mxu0 0
    %486 = vmatpush1.bf16.msra.mxu0 0
    %487 = vmatprep.subr.bf16.mxu0 0
    %488 = vmatpush1.bf16.msra.mxu0 0
    %489 = vmatprep.subr.bf16.mxu0 0
    %490 = vmatpush1.bf16.msra.mxu0 0
    %491 = vmatprep.subr.bf16.mxu0 0
    %492 = vmatpush1.bf16.msra.mxu0 0
    %493 = vmatprep.subr.bf16.mxu0 0
    %494 = vmatpush1.bf16.msra.mxu0 0
    %495 = vmatprep.subr.bf16.mxu0 0
    %496 = vmatpush1.bf16.msra.mxu0 0
    %497 = vmatprep.subr.bf16.mxu0 0
    %498 = vmatpush1.bf16.msra.mxu0 0
    %499 = vmatprep.mubr.bf16.mxu0 0
    %500 = vmatmul.mubr.bf16.gmra.mrb[0].mxu0 %v465
    %v501 = vpop.f32.mrb[0].mxu0
    %v502 = vadd.f32 %v213, %v501
    %v503 = vpop.f32.mrb[0].mxu0
    %v504 = vadd.f32 %v217, %v503
    %v505 = vpop.f32.mrb[0].mxu0
    %v506 = vpop.f32.mrb[0].mxu0
    %507 = vdwg.mxu0
    %v508 = vmax.f32 %v502, 0.0
    %v509 = vmax.f32 %v504, 0.0
    %v510 = vpack.c.bf16 %v508, %v508
    %v511 = vpack.c.bf16 %v509, %v509
    %v512 = vld [vmem:[%s3 + $0x2] sm:$0x1]
    %v513 = vld [vmem:[#allocation7] sm:$0xf]
    %v514 = vld [vmem:[#allocation7 + $0x4] sm:$0xf]
    %v515 = vld [vmem:[#allocation7 + $0x8] sm:$0xf]
    %v516 = vld [vmem:[#allocation7 + $0xc] sm:$0xf]
    %v517 = vld [vmem:[#allocation7 + $0x10] sm:$0xf]
    %v518 = vld [vmem:[#allocation7 + $0x14] sm:$0xf]
    %v519 = vld [vmem:[#allocation7 + $0x18] sm:$0xf]
    %v520 = vld [vmem:[#allocation7 + $0x1c] sm:$0xf]
    %v521 = vld [vmem:[#allocation7 + $0x20] sm:$0xf]
    %v522 = vld [vmem:[#allocation7 + $0x24] sm:$0xf]
    %v523 = vld [vmem:[#allocation7 + $0x28] sm:$0xf]
    %v524 = vld [vmem:[#allocation7 + $0x2c] sm:$0xf]
    %v525 = vld [vmem:[#allocation7 + $0x30] sm:$0xf]
    %v526 = vld [vmem:[#allocation7 + $0x34] sm:$0xf]
    %v527 = vld [vmem:[#allocation7 + $0x38] sm:$0xf]
    %v528 = vld [vmem:[#allocation7 + $0x3c] sm:$0xf]
    %v529 = vld [vmem:[#allocation7 + $0x40] sm:$0xf]
    %v530 = vld [vmem:[#allocation7 + $0x44] sm:$0xf]
    %v531 = vld [vmem:[#allocation7 + $0x48] sm:$0xf]
    %v532 = vld [vmem:[#allocation7 + $0x4c] sm:$0xf]
    %v533 = vld [vmem:[#allocation7 + $0x50] sm:$0xf]
    %v534 = vld [vmem:[#allocation7 + $0x54] sm:$0xf]
    %v535 = vld [vmem:[#allocation7 + $0x58] sm:$0xf]
    %v536 = vld [vmem:[#allocation7 + $0x5c] sm:$0xf]
    %v537 = vld [vmem:[#allocation7 + $0x60] sm:$0xf]
    %v538 = vld [vmem:[#allocation7 + $0x64] sm:$0xf]
    %v539 = vld [vmem:[#allocation7 + $0x68] sm:$0xf]
    %v540 = vld [vmem:[#allocation7 + $0x6c] sm:$0xf]
    %v541 = vld [vmem:[#allocation7 + $0x70] sm:$0xf]
    %v542 = vld [vmem:[#allocation7 + $0x74] sm:$0xf]
    %v543 = vld [vmem:[#allocation7 + $0x78] sm:$0xf]
    %v544 = vld [vmem:[#allocation7 + $0x7c] sm:$0xf]
    %v546 = vlaneseq
    %v547 = vshrl.u32 %v546, 7
    %v548 = vsub.s32 0, %v547
    %v549 = vrot.slane %v512, %v548
    %v583 = vunpack.c.l.b16 %v513
    %v584 = vunpack.c.l.b16 %v514
    %v585 = vunpack.c.l.b16 %v515
    %v586 = vunpack.c.l.b16 %v516
    %v587 = vunpack.c.l.b16 %v517
    %v588 = vunpack.c.l.b16 %v518
    %v589 = vunpack.c.l.b16 %v519
    %v590 = vunpack.c.l.b16 %v520
    %v591 = vunpack.c.l.b16 %v521
    %v592 = vunpack.c.l.b16 %v522
    %v593 = vunpack.c.l.b16 %v523
    %v594 = vunpack.c.l.b16 %v524
    %v595 = vunpack.c.l.b16 %v525
    %v596 = vunpack.c.l.b16 %v526
    %v597 = vunpack.c.l.b16 %v527
    %v598 = vunpack.c.l.b16 %v528
    %v599 = vunpack.c.l.b16 %v529
    %v600 = vunpack.c.l.b16 %v530
    %v601 = vunpack.c.l.b16 %v531
    %v602 = vunpack.c.l.b16 %v532
    %v603 = vunpack.c.l.b16 %v533
    %v604 = vunpack.c.l.b16 %v534
    %v605 = vunpack.c.l.b16 %v535
    %v606 = vunpack.c.l.b16 %v536
    %v607 = vunpack.c.l.b16 %v537
    %v608 = vunpack.c.l.b16 %v538
    %v609 = vunpack.c.l.b16 %v539
    %v610 = vunpack.c.l.b16 %v540
    %v611 = vunpack.c.l.b16 %v541
    %v612 = vunpack.c.l.b16 %v542
    %v613 = vunpack.c.l.b16 %v543
    %v614 = vunpack.c.l.b16 %v544
    %v615 = vpack.c.b16 %v584, %v583
    %v616 = vpack.c.b16 %v586, %v585
    %v617 = vpack.c.b16 %v588, %v587
    %v618 = vpack.c.b16 %v590, %v589
    %v619 = vpack.c.b16 %v592, %v591
    %v620 = vpack.c.b16 %v594, %v593
    %v621 = vpack.c.b16 %v596, %v595
    %v622 = vpack.c.b16 %v598, %v597
    %v623 = vpack.c.b16 %v600, %v599
    %v624 = vpack.c.b16 %v602, %v601
    %v625 = vpack.c.b16 %v604, %v603
    %v626 = vpack.c.b16 %v606, %v605
    %v627 = vpack.c.b16 %v608, %v607
    %v628 = vpack.c.b16 %v610, %v609
    %v629 = vpack.c.b16 %v612, %v611
    %v630 = vpack.c.b16 %v614, %v613
    %647 = vmatprep.subr.bf16.mxu0 0
    %648 = vmatpush1.bf16.msra.mxu0 %v615
    %649 = vmatprep.subr.bf16.mxu0 0
    %650 = vmatpush1.bf16.msra.mxu0 %v616
    %651 = vmatprep.subr.bf16.mxu0 0
    %652 = vmatpush1.bf16.msra.mxu0 %v617
    %653 = vmatprep.subr.bf16.mxu0 0
    %654 = vmatpush1.bf16.msra.mxu0 %v618
    %655 = vmatprep.subr.bf16.mxu0 0
    %656 = vmatpush1.bf16.msra.mxu0 %v619
    %657 = vmatprep.subr.bf16.mxu0 0
    %658 = vmatpush1.bf16.msra.mxu0 %v620
    %659 = vmatprep.subr.bf16.mxu0 0
    %660 = vmatpush1.bf16.msra.mxu0 %v621
    %661 = vmatprep.subr.bf16.mxu0 0
    %662 = vmatpush1.bf16.msra.mxu0 %v622
    %663 = vmatprep.subr.bf16.mxu0 0
    %664 = vmatpush1.bf16.msra.mxu0 %v623
    %665 = vmatprep.subr.bf16.mxu0 0
    %666 = vmatpush1.bf16.msra.mxu0 %v624
    %667 = vmatprep.subr.bf16.mxu0 0
    %668 = vmatpush1.bf16.msra.mxu0 %v625
    %669 = vmatprep.subr.bf16.mxu0 0
    %670 = vmatpush1.bf16.msra.mxu0 %v626
    %671 = vmatprep.subr.bf16.mxu0 0
    %672 = vmatpush1.bf16.msra.mxu0 %v627
    %673 = vmatprep.subr.bf16.mxu0 0
    %674 = vmatpush1.bf16.msra.mxu0 %v628
    %675 = vmatprep.subr.bf16.mxu0 0
    %676 = vmatpush1.bf16.msra.mxu0 %v629
    %677 = vmatprep.subr.bf16.mxu0 0
    %678 = vmatpush1.bf16.msra.mxu0 %v630
    %679 = vmatprep.mubr.bf16.mxu0 %v511
    %680 = vmatmul.mubr.bf16.gmra.mrb[0].mxu0 %v510
    %v681 = vpop.f32.mrb[0].mxu0
    %v682 = vadd.f32 %v549, %v681
    %v683 = vpop.f32.mrb[0].mxu0
    %v684 = vpop.f32.mrb[0].mxu0
    %v685 = vpop.f32.mrb[0].mxu0
    %686 = vdwg.mxu0
    %vm687 = vcmp.lt.s32.totalorder %v269, 64
    %v688 = vsel %vm687, %v682, 0.0
    %v689 = vmul.f32 %v688, %v688
    %690 = vadd.xlane.f32.xlu0 %v689
    %v691 = vpop.xlane.xlu0 %690
    %v692 = vmax.f32 %v691, 1e-24
    %v693 = vrsqrt.pop %v692
    %v694 = vsel %vm687, %v693, 1.0
    %v695 = vmul.f32 %v682, %v694
    %v728 = vlaneseq
    %v729 = vshrl.u32 %v728, 7
    %v730 = vsub.s32 %v269, %v729
    %v731 = vrot.slane %v156, %v730
    %v732 = vlaneseq
    %v733 = vshrl.u32 %v732, 7
    %v734 = vsub.s32 %v274, %v733
    %v735 = vrot.slane %v157, %v734
    %v736 = vsel %vm279, %v735, %v731
    %v737 = vlaneseq
    %v738 = vshrl.u32 %v737, 7
    %v739 = vsub.s32 %v281, %v738
    %v740 = vrot.slane %v158, %v739
    %v741 = vsel %vm286, %v740, %v736
    %v742 = vlaneseq
    %v743 = vshrl.u32 %v742, 7
    %v744 = vsub.s32 %v288, %v743
    %v745 = vrot.slane %v159, %v744
    %v746 = vsel %vm293, %v745, %v741
    %v747 = vlaneseq
    %v748 = vshrl.u32 %v747, 7
    %v749 = vsub.s32 %v269, %v748
    %v750 = vrot.slane %v160, %v749
    %v751 = vlaneseq
    %v752 = vshrl.u32 %v751, 7
    %v753 = vsub.s32 %v274, %v752
    %v754 = vrot.slane %v161, %v753
    %v755 = vsel %vm279, %v754, %v750
    %v756 = vlaneseq
    %v757 = vshrl.u32 %v756, 7
    %v758 = vsub.s32 %v281, %v757
    %v759 = vrot.slane %v162, %v758
    %v760 = vsel %vm286, %v759, %v755
    %v761 = vlaneseq
    %v762 = vshrl.u32 %v761, 7
    %v763 = vsub.s32 %v288, %v762
    %v764 = vrot.slane %v163, %v763
    %v765 = vsel %vm293, %v764, %v760
    %v766 = vlaneseq
    %v767 = vshrl.u32 %v766, 7
    %v768 = vsub.s32 %v269, %v767
    %v769 = vrot.slane %v164, %v768
    %v770 = vlaneseq
    %v771 = vshrl.u32 %v770, 7
    %v772 = vsub.s32 %v274, %v771
    %v773 = vrot.slane %v165, %v772
    %v774 = vsel %vm279, %v773, %v769
    %v775 = vlaneseq
    %v776 = vshrl.u32 %v775, 7
    %v777 = vsub.s32 %v281, %v776
    %v778 = vrot.slane %v166, %v777
    %v779 = vsel %vm286, %v778, %v774
    %v780 = vlaneseq
    %v781 = vshrl.u32 %v780, 7
    %v782 = vsub.s32 %v288, %v781
    %v783 = vrot.slane %v167, %v782
    %v784 = vsel %vm293, %v783, %v779
    %v785 = vlaneseq
    %v786 = vshrl.u32 %v785, 7
    %v787 = vsub.s32 %v269, %v786
    %v788 = vrot.slane %v168, %v787
    %v789 = vlaneseq
    %v790 = vshrl.u32 %v789, 7
    %v791 = vsub.s32 %v274, %v790
    %v792 = vrot.slane %v169, %v791
    %v793 = vsel %vm279, %v792, %v788
    %v794 = vlaneseq
    %v795 = vshrl.u32 %v794, 7
    %v796 = vsub.s32 %v281, %v795
    %v797 = vrot.slane %v170, %v796
    %v798 = vsel %vm286, %v797, %v793
    %v799 = vlaneseq
    %v800 = vshrl.u32 %v799, 7
    %v801 = vsub.s32 %v288, %v800
    %v802 = vrot.slane %v171, %v801
    %v803 = vsel %vm293, %v802, %v798
    %v804 = vlaneseq
    %v805 = vshrl.u32 %v804, 7
    %v806 = vsub.s32 %v269, %v805
    %v807 = vrot.slane %v172, %v806
    %v808 = vlaneseq
    %v809 = vshrl.u32 %v808, 7
    %v810 = vsub.s32 %v274, %v809
    %v811 = vrot.slane %v173, %v810
    %v812 = vsel %vm279, %v811, %v807
    %v813 = vlaneseq
    %v814 = vshrl.u32 %v813, 7
    %v815 = vsub.s32 %v281, %v814
    %v816 = vrot.slane %v174, %v815
    %v817 = vsel %vm286, %v816, %v812
    %v818 = vlaneseq
    %v819 = vshrl.u32 %v818, 7
    %v820 = vsub.s32 %v288, %v819
    %v821 = vrot.slane %v175, %v820
    %v822 = vsel %vm293, %v821, %v817
    %v823 = vlaneseq
    %v824 = vshrl.u32 %v823, 7
    %v825 = vsub.s32 %v269, %v824
    %v826 = vrot.slane %v176, %v825
    %v827 = vlaneseq
    %v828 = vshrl.u32 %v827, 7
    %v829 = vsub.s32 %v274, %v828
    %v830 = vrot.slane %v177, %v829
    %v831 = vsel %vm279, %v830, %v826
    %v832 = vlaneseq
    %v833 = vshrl.u32 %v832, 7
    %v834 = vsub.s32 %v281, %v833
    %v835 = vrot.slane %v178, %v834
    %v836 = vsel %vm286, %v835, %v831
    %v837 = vlaneseq
    %v838 = vshrl.u32 %v837, 7
    %v839 = vsub.s32 %v288, %v838
    %v840 = vrot.slane %v179, %v839
    %v841 = vsel %vm293, %v840, %v836
    %v842 = vlaneseq
    %v843 = vshrl.u32 %v842, 7
    %v844 = vsub.s32 %v269, %v843
    %v845 = vrot.slane %v180, %v844
    %v846 = vlaneseq
    %v847 = vshrl.u32 %v846, 7
    %v848 = vsub.s32 %v274, %v847
    %v849 = vrot.slane %v181, %v848
    %v850 = vsel %vm279, %v849, %v845
    %v851 = vlaneseq
    %v852 = vshrl.u32 %v851, 7
    %v853 = vsub.s32 %v281, %v852
    %v854 = vrot.slane %v182, %v853
    %v855 = vsel %vm286, %v854, %v850
    %v856 = vlaneseq
    %v857 = vshrl.u32 %v856, 7
    %v858 = vsub.s32 %v288, %v857
    %v859 = vrot.slane %v183, %v858
    %v860 = vsel %vm293, %v859, %v855
    %v861 = vlaneseq
    %v862 = vshrl.u32 %v861, 7
    %v863 = vsub.s32 %v269, %v862
    %v864 = vrot.slane %v184, %v863
    %v865 = vlaneseq
    %v866 = vshrl.u32 %v865, 7
    %v867 = vsub.s32 %v274, %v866
    %v868 = vrot.slane %v185, %v867
    %v869 = vsel %vm279, %v868, %v864
    %v870 = vlaneseq
    %v871 = vshrl.u32 %v870, 7
    %v872 = vsub.s32 %v281, %v871
    %v873 = vrot.slane %v186, %v872
    %v874 = vsel %vm286, %v873, %v869
    %v875 = vlaneseq
    %v876 = vshrl.u32 %v875, 7
    %v877 = vsub.s32 %v288, %v876
    %v878 = vrot.slane %v187, %v877
    %v879 = vsel %vm293, %v878, %v874
    %v880 = vsel %vm428, %v765, %v746
    %v881 = vsel %vm430, %v784, %v880
    %v882 = vsel %vm432, %v803, %v881
    %v883 = vsel %vm434, %v822, %v882
    %v884 = vsel %vm436, %v841, %v883
    %v885 = vsel %vm438, %v860, %v884
    %v886 = vsel %vm440, %v879, %v885
    %v888 = vsel %vm463, %v886, 0.0
    %889 = vst [vmem:[#allocation8] sm:$0xff] %v508
    %890 = vst [vmem:[#allocation8 + $0x8] sm:$0xff] %v509
    %891 = vst [vmem:[#allocation8 + $0x10] sm:$0xff] %v888
    %892 = vst [vmem:[#allocation8 + $0x18] sm:$0xff] %v695
    // Predicated region
    $region30: #{tpu_custom_call.1} parent=1 // pred_check
      _
    $region31: #{tpu_custom_call.1} parent=1 // pred_check_branch
      %894 = sbr.rel (0) target = $region33
    $region32: #{tpu_custom_call.1} parent=1 // pred_region
      %s896 = ssub.s32 512, 512
      %897 = vsyncadd [#allocation4], %s896
      %s899 = sshll.u32 [#allocation8], 4
      %s900 = int_to_ptr.vmem [resolvable:$true] %s899
      %902 = dma.vmem_to_hbm [thread:$0]  %s900, 512, %s4, [#allocation4]
    $region33: #{tpu_custom_call.1} parent=1 // pred_fallthru
      _
    // Predicated region
    $region34: #{tpu_custom_call.1} parent=1 // pred_check
      _
    $region35: #{tpu_custom_call.1} parent=1 // pred_check_branch
      %904 = sbr.rel (0) target = $region37
    $region36: #{tpu_custom_call.1} parent=1 // pred_region
      %905 = dma.done [#allocation4], 512
    $region37: #{tpu_custom_call.1} parent=1 // pred_fallthru
      _
    %906 = vsyncpa [#allocation3], 1
    %907 = vsyncpa [#allocation6], 1
    %908 = vsyncpa [#allocation4], 1

</llo_original>
